<compile_context>
chip_gen: v6e
topology: v6e:2x2x1
jax: 0.10.0
libtpu: 0.0.40
codegen_flags: <defaults>
</compile_context>

<pallas_src>
import functools

import jax
import jax.numpy as jnp
from jax.experimental import pallas as pl
from jax.experimental.pallas import tpu as pltpu


def _round_up(x, m):
    return ((x + m - 1) // m) * m


def bert2d_output_kernel(hs_ref, w_ref, b_ref, res_ref, gamma_ref, beta_ref,
                         out_ref, *, eps):
    # hs_ref : (tm, I)   hidden_states tile (bf16 or f32)
    # w_ref  : (I,  H)   dense weight, already [in, out] (bf16 or f32), resident
    # b_ref  : (1,  H)   dense bias (f32)
    # res_ref: (tm, H)   residual / input_tensor tile (f32)
    # gamma_ref, beta_ref : (1, H) LayerNorm affine params (f32)
    # out_ref: (tm, H)

    # Dense projection on the MXU, accumulate in f32.
    x = jnp.dot(hs_ref[...], w_ref[...], preferred_element_type=jnp.float32)

    # TODO(synk): dropout is identity here (inference); training-mode dropout
    # would use pltpu.prng_seed / pltpu.prng_random_bits.

    # Bias + residual add (all f32).
    x = x + b_ref[...] + res_ref[...]

    # LayerNorm over the hidden (last) axis — one-pass variance.
    inv_h = 1.0 / x.shape[-1]
    s1 = jnp.sum(x, axis=-1, keepdims=True)
    s2 = jnp.sum(x * x, axis=-1, keepdims=True)
    mean = s1 * inv_h
    var = jnp.maximum(s2 * inv_h - mean * mean, 0.0)
    inv = jax.lax.rsqrt(var + eps)
    y = (x - mean) * inv * gamma_ref[...] + beta_ref[...]

    out_ref[...] = y.astype(out_ref.dtype)


def bert2d_output(hidden_states, input_tensor, w_t, bias, gamma, beta,
                  *, eps=1e-12, tm=256, matmul_dtype=jnp.bfloat16,
                  vmem_limit_bytes=64 * 1024 * 1024):
    """hidden_states: [B, S, I]; input_tensor: [B, S, H]; w_t: [I, H]."""
    B, S, I = hidden_states.shape
    H = input_tensor.shape[-1]
    M = B * S
    out_dtype = input_tensor.dtype

    # MXU operands in bf16 (f32 accumulate inside the kernel); LN path in f32.
    hs2d = hidden_states.reshape(M, I).astype(matmul_dtype)
    w2d = w_t.astype(matmul_dtype)
    res2d = input_tensor.reshape(M, H).astype(jnp.float32)
    b2d = bias.reshape(1, H).astype(jnp.float32)
    g2d = gamma.reshape(1, H).astype(jnp.float32)
    be2d = beta.reshape(1, H).astype(jnp.float32)

    # Row tile: large & MXU-aligned, but never bigger than (padded) M.
    tm = max(16, min(tm, _round_up(M, 16)))
    Mp = _round_up(M, tm)
    if Mp != M:
        # Zero-pad extra rows; they are LayerNormed independently (no cross-row
        # mixing) and sliced off before returning.
        hs2d = jnp.pad(hs2d, ((0, Mp - M), (0, 0)))
        res2d = jnp.pad(res2d, ((0, Mp - M), (0, 0)))

    grid = (Mp // tm,)
    kernel = functools.partial(bert2d_output_kernel, eps=eps)

    out2d = pl.pallas_call(
        kernel,
        out_shape=jax.ShapeDtypeStruct((Mp, H), out_dtype),
        grid_spec=pltpu.PrefetchScalarGridSpec(
            num_scalar_prefetch=0,
            grid=grid,
            in_specs=[
                pl.BlockSpec((tm, I), lambda i: (i, 0)),   # hidden_states tile
                pl.BlockSpec((I, H), lambda i: (0, 0)),    # weight (resident)
                pl.BlockSpec((1, H), lambda i: (0, 0)),    # bias
                pl.BlockSpec((tm, H), lambda i: (i, 0)),   # residual tile
                pl.BlockSpec((1, H), lambda i: (0, 0)),    # gamma
                pl.BlockSpec((1, H), lambda i: (0, 0)),    # beta
            ],
            out_specs=pl.BlockSpec((tm, H), lambda i: (i, 0)),
        ),
        compiler_params=pltpu.CompilerParams(
            dimension_semantics=("parallel",),
            vmem_limit_bytes=vmem_limit_bytes,
        ),
    )(hs2d, w2d, b2d, res2d, g2d, be2d)

    if Mp != M:
        out2d = out2d[:M]
    return out2d.reshape(B, S, H)


def reference(hidden_states, input_tensor, w_t, bias, gamma, beta, eps,
              matmul_dtype=jnp.bfloat16):
    # Same numerics as the kernel: bf16 MXU operands, f32 accumulate, f32 LN.
    hs = hidden_states.astype(matmul_dtype)
    w = w_t.astype(matmul_dtype)
    x = jnp.einsum("bsi,ih->bsh", hs, w,
                   preferred_element_type=jnp.float32)
    x = x + bias.astype(jnp.float32) + input_tensor.astype(jnp.float32)
    mean = jnp.mean(x, axis=-1, keepdims=True)
    var = jnp.mean((x - mean) ** 2, axis=-1, keepdims=True)
    y = (x - mean) * jax.lax.rsqrt(var + eps) * gamma + beta
    return y.astype(input_tensor.dtype)


if __name__ == "__main__":
    # Small config: batch=2, seq=8, hidden=32, intermediate=64
    B, S, H, I = 2, 8, 32, 64
    eps = 1e-12

    key = jax.random.PRNGKey(0)
    k1, k2, k3, k4 = jax.random.split(key, 4)

    hidden_states = jax.random.normal(k1, (B, S, I), dtype=jnp.float32)
    input_tensor = jax.random.normal(k2, (B, S, H), dtype=jnp.float32)

    # Deterministic parameter init (nn.Linear: weight [H, I], bias [H]).
    w = jax.random.normal(k3, (H, I), dtype=jnp.float32) * 0.02
    w_t = w.T  # [I, H] for the kernel
    bias = jax.random.normal(k4, (H,), dtype=jnp.float32) * 0.02
    gamma = jnp.ones((H,), dtype=jnp.float32)
    beta = jnp.zeros((H,), dtype=jnp.float32)

    out = bert2d_output(hidden_states, input_tensor, w_t, bias, gamma, beta,
                        eps=eps)
    out = jax.block_until_ready(out)

    ref = reference(hidden_states, input_tensor, w_t, bias, gamma, beta, eps)
    assert out.shape == (B, S, H)
    assert jnp.allclose(out, ref, atol=1e-4, rtol=1e-4), (
        float(jnp.max(jnp.abs(out - ref))))

    print("KERNEL_OK")
</pallas_src>

<mosaic_0001>
module attributes {stable_mosaic.version = 11 : i64} {
  func.func @bert2d_output_kernel(%arg0: i32, %arg1: memref<16x64xbf16, #tpu.memory_space<vmem>>, %arg2: memref<64x32xbf16, #tpu.memory_space<vmem>>, %arg3: memref<1x32xf32, #tpu.memory_space<vmem>>, %arg4: memref<16x32xf32, #tpu.memory_space<vmem>>, %arg5: memref<1x32xf32, #tpu.memory_space<vmem>>, %arg6: memref<1x32xf32, #tpu.memory_space<vmem>>, %arg7: memref<16x32xf32, #tpu.memory_space<vmem>>) attributes {dimension_semantics = [#tpu.dimension_semantics<parallel>], iteration_bounds = array<i64: 1>, scalar_prefetch = 0 : i64, scratch_operands = 0 : i64, tpu.core_type = #tpu.core_type<tc>, window_params = [{transform_indices = @transform_0, window_bounds = array<i64: 16, 64>}, {pipeline_mode = #tpu.pipeline_mode<synchronous>, transform_indices = @transform_1, window_bounds = array<i64: 64, 32>}, {pipeline_mode = #tpu.pipeline_mode<synchronous>, transform_indices = @transform_2, window_bounds = array<i64: 1, 32>}, {transform_indices = @transform_3, window_bounds = array<i64: 16, 32>}, {pipeline_mode = #tpu.pipeline_mode<synchronous>, transform_indices = @transform_4, window_bounds = array<i64: 1, 32>}, {pipeline_mode = #tpu.pipeline_mode<synchronous>, transform_indices = @transform_5, window_bounds = array<i64: 1, 32>}, {transform_indices = @transform_6, window_bounds = array<i64: 16, 32>}]} {
    %c0 = arith.constant 0 : index
    %c0_0 = arith.constant 0 : index
    %0 = vector.load %arg1[%c0, %c0_0] : memref<16x64xbf16, #tpu.memory_space<vmem>>, vector<16x64xbf16>
    %c0_1 = arith.constant 0 : index
    %c0_2 = arith.constant 0 : index
    %1 = vector.load %arg2[%c0_1, %c0_2] : memref<64x32xbf16, #tpu.memory_space<vmem>>, vector<64x32xbf16>
    %cst = arith.constant dense<0.000000e+00> : vector<16x32xf32>
    %2 = tpu.matmul %0, %1, %cst {dimension_numbers = #tpu.dot_dimension_numbers<[1], [0], [0], [1], [0, 0, 1, 1], [], []>} : vector<16x64xbf16>, vector<64x32xbf16>, vector<16x32xf32> -> vector<16x32xf32>
    %c0_3 = arith.constant 0 : index
    %c0_4 = arith.constant 0 : index
    %3 = vector.load %arg3[%c0_3, %c0_4] : memref<1x32xf32, #tpu.memory_space<vmem>>, vector<1x32xf32>
    %4 = vector.broadcast %3 : vector<1x32xf32> to vector<16x32xf32>
    %5 = arith.addf %2, %4 : vector<16x32xf32>
    %c0_5 = arith.constant 0 : index
    %c0_6 = arith.constant 0 : index
    %6 = vector.load %arg4[%c0_5, %c0_6] : memref<16x32xf32, #tpu.memory_space<vmem>>, vector<16x32xf32>
    %7 = arith.addf %5, %6 : vector<16x32xf32>
    %cst_7 = arith.constant dense<0.000000e+00> : vector<16xf32>
    %8 = vector.multi_reduction <add>, %7, %cst_7 [1] : vector<16x32xf32> to vector<16xf32>
    %9 = vector.shape_cast %8 : vector<16xf32> to vector<16x1xf32>
    %10 = arith.mulf %7, %7 : vector<16x32xf32>
    %cst_8 = arith.constant dense<0.000000e+00> : vector<16xf32>
    %11 = vector.multi_reduction <add>, %10, %cst_8 [1] : vector<16x32xf32> to vector<16xf32>
    %12 = vector.shape_cast %11 : vector<16xf32> to vector<16x1xf32>
    %cst_9 = arith.constant 3.125000e-02 : f32
    %13 = vector.broadcast %cst_9 : f32 to vector<16x1xf32>
    %14 = arith.mulf %9, %13 : vector<16x1xf32>
    %cst_10 = arith.constant 3.125000e-02 : f32
    %15 = vector.broadcast %cst_10 : f32 to vector<16x1xf32>
    %16 = arith.mulf %12, %15 : vector<16x1xf32>
    %17 = arith.mulf %14, %14 : vector<16x1xf32>
    %18 = arith.subf %16, %17 : vector<16x1xf32>
    %cst_11 = arith.constant 0.000000e+00 : f32
    %19 = vector.broadcast %cst_11 : f32 to vector<16x1xf32>
    %20 = arith.maximumf %18, %19 : vector<16x1xf32>
    %cst_12 = arith.constant 9.99999996E-13 : f32
    %21 = vector.broadcast %cst_12 : f32 to vector<16x1xf32>
    %22 = arith.addf %20, %21 : vector<16x1xf32>
    %23 = math.rsqrt %22 : vector<16x1xf32>
    %24 = vector.broadcast %14 : vector<16x1xf32> to vector<16x32xf32>
    %25 = arith.subf %7, %24 : vector<16x32xf32>
    %26 = vector.broadcast %23 : vector<16x1xf32> to vector<16x32xf32>
    %27 = arith.mulf %25, %26 : vector<16x32xf32>
    %c0_13 = arith.constant 0 : index
    %c0_14 = arith.constant 0 : index
    %28 = vector.load %arg5[%c0_13, %c0_14] : memref<1x32xf32, #tpu.memory_space<vmem>>, vector<1x32xf32>
    %29 = vector.broadcast %28 : vector<1x32xf32> to vector<16x32xf32>
    %30 = arith.mulf %27, %29 : vector<16x32xf32>
    %c0_15 = arith.constant 0 : index
    %c0_16 = arith.constant 0 : index
    %31 = vector.load %arg6[%c0_15, %c0_16] : memref<1x32xf32, #tpu.memory_space<vmem>>, vector<1x32xf32>
    %32 = vector.broadcast %31 : vector<1x32xf32> to vector<16x32xf32>
    %33 = arith.addf %30, %32 : vector<16x32xf32>
    %c0_17 = arith.constant 0 : index
    %c0_18 = arith.constant 0 : index
    %34 = vector.load %arg7[%c0_17, %c0_18] : memref<16x32xf32, #tpu.memory_space<vmem>>, vector<16x32xf32>
    tpu.vector_store %arg7[%c0_17, %c0_18], %33 {strides = array<i32>} : memref<16x32xf32, #tpu.memory_space<vmem>>, vector<16x32xf32>,
    return
  }
  func.func @transform_0(%arg0: i32) -> (i32, i32) {
    %c0_i32 = arith.constant 0 : i32
    %c0_i32_0 = arith.constant 0 : i32
    return %arg0, %c0_i32 : i32, i32
  }
  func.func @transform_1(%arg0: i32) -> (i32, i32) {
    %c0_i32 = arith.constant 0 : i32
    %c0_i32_0 = arith.constant 0 : i32
    %c0_i32_1 = arith.constant 0 : i32
    return %c0_i32, %c0_i32_0 : i32, i32
  }
  func.func @transform_2(%arg0: i32) -> (i32, i32) {
    %c0_i32 = arith.constant 0 : i32
    %c0_i32_0 = arith.constant 0 : i32
    %c0_i32_1 = arith.constant 0 : i32
    return %c0_i32, %c0_i32_0 : i32, i32
  }
  func.func @transform_3(%arg0: i32) -> (i32, i32) {
    %c0_i32 = arith.constant 0 : i32
    %c0_i32_0 = arith.constant 0 : i32
    return %arg0, %c0_i32 : i32, i32
  }
  func.func @transform_4(%arg0: i32) -> (i32, i32) {
    %c0_i32 = arith.constant 0 : i32
    %c0_i32_0 = arith.constant 0 : i32
    %c0_i32_1 = arith.constant 0 : i32
    return %c0_i32, %c0_i32_0 : i32, i32
  }
  func.func @transform_5(%arg0: i32) -> (i32, i32) {
    %c0_i32 = arith.constant 0 : i32
    %c0_i32_0 = arith.constant 0 : i32
    %c0_i32_1 = arith.constant 0 : i32
    return %c0_i32, %c0_i32_0 : i32, i32
  }
  func.func @transform_6(%arg0: i32) -> (i32, i32) {
    %c0_i32 = arith.constant 0 : i32
    %c0_i32_0 = arith.constant 0 : i32
    return %arg0, %c0_i32 : i32, i32
  }
}

</mosaic_0001>

<llo_original>
// kernel: tpu_custom_call.1
$region0: #{tpu_custom_call.1}
  #allocation0 [shape = 'u32[]', space=smem, size = 0x4, offset = 0x4, fixed_abs, tag = 'smem constant byte address 0x4 - core index']
  #allocation1 [shape = 'u32[144,128]{1,0:T(1,128)}', space=vmem, size = 0x12000, scoped, tag = 'internal scratch']
  %s0 = inlined_call_operand.vmem [shape: bf16[16,64], index: 0, kind: input, shape index: {}]
  %s1 = inlined_call_operand.vmem [shape: bf16[64,32], index: 1, kind: input, shape index: {}]
  %s2 = inlined_call_operand.vmem [shape: f32[1,32], index: 2, kind: input, shape index: {}]
  %s3 = inlined_call_operand.vmem [shape: f32[16,32], index: 3, kind: input, shape index: {}]
  %s4 = inlined_call_operand.vmem [shape: f32[1,32], index: 4, kind: input, shape index: {}]
  %s5 = inlined_call_operand.vmem [shape: f32[1,32], index: 5, kind: input, shape index: {}]
  %s6 = inlined_call_operand.hbm [shape: f32[16,32], index: 6, kind: output, shape index: {}]
  %s7 = sld [smem:[#allocation0]]
  $region34: #{tpu_custom_call.1} parent=0
    _
  %s9 = ssub.s32 1, %s7
  %s10 = scalar_select 0, %s9, %s7
  $region1: #{tpu_custom_call.1} parent=0
    #allocation2 [shape = 'u8[8192]{0}', space=vmem, size = 0x2000, scoped, tag = 'output window, operand 0, single buffered']
    #allocation3 [shape = 's32[1]{0}', space=sflag, size = 0x4, scoped, tag = 'scoped memory for tpu_custom_call.1']
    %11 = vsyncpa [#allocation3], 0
    // Predicated region
    $region2: #{tpu_custom_call.1} parent=1 // pred_check
      _
    $region3: #{tpu_custom_call.1} parent=1 // pred_check_branch
      %13 = sbr.rel (0) target = $region5
    $region4: #{tpu_custom_call.1} parent=1 // pred_region
      _
    $region5: #{tpu_custom_call.1} parent=1 // pred_fallthru
      _
    // Predicated region
    $region6: #{tpu_custom_call.1} parent=1 // pred_check
      _
    $region7: #{tpu_custom_call.1} parent=1 // pred_check_branch
      %15 = sbr.rel (0) target = $region9
    $region8: #{tpu_custom_call.1} parent=1 // pred_region
      _
    $region9: #{tpu_custom_call.1} parent=1 // pred_fallthru
      _
    // Predicated region
    $region10: #{tpu_custom_call.1} parent=1 // pred_check
      _
    $region11: #{tpu_custom_call.1} parent=1 // pred_check_branch
      %17 = sbr.rel (0) target = $region13
    $region12: #{tpu_custom_call.1} parent=1 // pred_region
      _
    $region13: #{tpu_custom_call.1} parent=1 // pred_fallthru
      _
    // Predicated region
    $region14: #{tpu_custom_call.1} parent=1 // pred_check
      _
    $region15: #{tpu_custom_call.1} parent=1 // pred_check_branch
      %19 = sbr.rel (0) target = $region17
    $region16: #{tpu_custom_call.1} parent=1 // pred_region
      _
    $region17: #{tpu_custom_call.1} parent=1 // pred_fallthru
      _
    // Predicated region
    $region18: #{tpu_custom_call.1} parent=1 // pred_check
      _
    $region19: #{tpu_custom_call.1} parent=1 // pred_check_branch
      %21 = sbr.rel (0) target = $region21
    $region20: #{tpu_custom_call.1} parent=1 // pred_region
      _
    $region21: #{tpu_custom_call.1} parent=1 // pred_fallthru
      _
    // Predicated region
    $region22: #{tpu_custom_call.1} parent=1 // pred_check
      _
    $region23: #{tpu_custom_call.1} parent=1 // pred_check_branch
      %23 = sbr.rel (0) target = $region25
    $region24: #{tpu_custom_call.1} parent=1 // pred_region
      _
    $region25: #{tpu_custom_call.1} parent=1 // pred_fallthru
      _
    %v25 = vld [vmem:[%s0] sm:$0xf]
    %v26 = vld [vmem:[%s0 + $0x4] sm:$0xf]
    %v27 = vld [vmem:[%s1] sm:$0xf]
    %v28 = vld [vmem:[%s1 + $0x4] sm:$0xf]
    %v29 = vld [vmem:[%s1 + $0x8] sm:$0xf]
    %v30 = vld [vmem:[%s1 + $0xc] sm:$0xf]
    %v31 = vld [vmem:[%s1 + $0x10] sm:$0xf]
    %v32 = vld [vmem:[%s1 + $0x14] sm:$0xf]
    %v33 = vld [vmem:[%s1 + $0x18] sm:$0xf]
    %v34 = vld [vmem:[%s1 + $0x1c] sm:$0xf]
    %v35 = vld [vmem:[%s2] sm:$0x1]
    %v37 = vlaneseq
    %v38 = vshrl.u32 %v37, 7
    %v39 = vsub.s32 0, %v38
    %v40 = vrot.slane %v35, %v39
    %v44 = vunpack.c.l.b16 %v25
    %v45 = vunpack.c.l.b16 %v26
    %v46 = vpack.c.b16 %v45, %v44
    %v55 = vunpack.c.l.b16 %v27
    %v56 = vunpack.c.l.b16 %v28
    %v57 = vunpack.c.l.b16 %v29
    %v58 = vunpack.c.l.b16 %v30
    %v59 = vunpack.c.l.b16 %v31
    %v60 = vunpack.c.l.b16 %v32
    %v61 = vunpack.c.l.b16 %v33
    %v62 = vunpack.c.l.b16 %v34
    %v63 = vpack.c.b16 %v56, %v55
    %v64 = vpack.c.b16 %v58, %v57
    %v65 = vpack.c.b16 %v60, %v59
    %v66 = vpack.c.b16 %v62, %v61
    %vm71 = vcmask 523264
    %v73 = vsel %vm71, %v46, 0
    %75 = vmatprep.subr.bf16.mxu0 0
    %76 = vmatpush1.bf16.msra.mxu0 0
    %77 = vmatprep.subr.bf16.mxu0 0
    %78 = vmatpush1.bf16.msra.mxu0 0
    %79 = vmatprep.subr.bf16.mxu0 0
    %80 = vmatpush1.bf16.msra.mxu0 0
    %81 = vmatprep.subr.bf16.mxu0 0
    %82 = vmatpush1.bf16.msra.mxu0 0
    %83 = vmatprep.subr.bf16.mxu0 0
    %84 = vmatpush1.bf16.msra.mxu0 %v66
    %85 = vmatprep.subr.bf16.mxu0 0
    %86 = vmatpush1.bf16.msra.mxu0 %v65
    %87 = vmatprep.subr.bf16.mxu0 0
    %88 = vmatpush1.bf16.msra.mxu0 %v64
    %89 = vmatprep.subr.bf16.mxu0 0
    %90 = vmatpush1.bf16.msra.mxu0 %v63
    %91 = vmatprep.subr.bf16.mxu0 0
    %92 = vmatpush2.bf16.msra.mxu0 0
    %93 = vmatprep.subr.bf16.mxu0 0
    %94 = vmatpush2.bf16.msra.mxu0 0
    %95 = vmatprep.subr.bf16.mxu0 0
    %96 = vmatpush2.bf16.msra.mxu0 0
    %97 = vmatprep.subr.bf16.mxu0 0
    %98 = vmatpush2.bf16.msra.mxu0 0
    %99 = vmatprep.subr.bf16.mxu0 0
    %100 = vmatpush2.bf16.msra.mxu0 0
    %101 = vmatprep.subr.bf16.mxu0 0
    %102 = vmatpush2.bf16.msra.mxu0 0
    %103 = vmatprep.subr.bf16.mxu0 0
    %104 = vmatpush2.bf16.msra.mxu0 0
    %105 = vmatprep.subr.bf16.mxu0 0
    %106 = vmatpush2.bf16.msra.mxu0 0
    %107 = vmatprep.mubr.bf16.mxu0 0
    %108 = vmatmul.mubr.bf16.gmra.mxu0 %v73
    %v109 = vpop.f32.mrf.mxu0
    %v110 = vadd.f32 %v40, %v109
    %v111 = vpop.f32.mrf.mxu0
    %v112 = vpop.f32.mrf.mxu0
    %v113 = vadd.f32 %v40, %v112
    %v114 = vpop.f32.mrf.mxu0
    %115 = vdwg.mxu0
    %v116 = vld [vmem:[%s3] sm:$0xff]
    %v117 = vld [vmem:[%s3 + $0x8] sm:$0xff]
    %v118 = vadd.f32 %v110, %v116
    %v119 = vadd.f32 %v113, %v117
    %vm120 = vcmask 261120
    %v121 = vsel %vm120, %v118, 0.0
    %122 = vadd.xlane.f32.xlu0 %v121
    %v123 = vpop.xlane.xlu0 %122
    %v124 = vsel %vm120, %v119, 0.0
    %125 = vadd.xlane.f32.xlu0 %v124
    %v126 = vpop.xlane.xlu0 %125
    %v127 = vmul.f32 %v118, %v118
    %v128 = vmul.f32 %v119, %v119
    %v129 = vsel %vm120, %v127, 0.0
    %130 = vadd.xlane.f32.xlu0 %v129
    %v131 = vpop.xlane.xlu0 %130
    %v132 = vsel %vm120, %v128, 0.0
    %133 = vadd.xlane.f32.xlu0 %v132
    %v134 = vpop.xlane.xlu0 %133
    %v135 = vmul.f32 %v123, 0.03125
    %v136 = vmul.f32 %v126, 0.03125
    %v137 = vmul.f32 %v131, 0.03125
    %v138 = vmul.f32 %v134, 0.03125
    %v139 = vmul.f32 %v135, %v135
    %v140 = vmul.f32 %v136, %v136
    %v141 = vsub.f32 %v137, %v139
    %v142 = vsub.f32 %v138, %v140
    %v143 = vmax.f32 %v141, 0.0
    %v144 = vmax.f32 %v142, 0.0
    %v145 = vadd.f32 %v143, 1e-12
    %v146 = vadd.f32 %v144, 1e-12
    %v147 = vrsqrt.pop %v145
    %v148 = vrsqrt.pop %v146
    %v149 = vsub.f32 %v118, %v135
    %v150 = vsub.f32 %v119, %v136
    %v151 = vmul.f32 %v149, %v147
    %v152 = vmul.f32 %v150, %v148
    %v153 = vld [vmem:[%s4] sm:$0x1]
    %v155 = vlaneseq
    %v156 = vshrl.u32 %v155, 7
    %v157 = vsub.s32 0, %v156
    %v158 = vrot.slane %v153, %v157
    %v160 = vmul.f32 %v151, %v158
    %v161 = vmul.f32 %v152, %v158
    %v162 = vld [vmem:[%s5] sm:$0x1]
    %v164 = vlaneseq
    %v165 = vshrl.u32 %v164, 7
    %v166 = vsub.s32 0, %v165
    %v167 = vrot.slane %v162, %v166
    %v169 = vadd.f32 %v160, %v167
    %v170 = vadd.f32 %v161, %v167
    %171 = vst.msk [vmem:[#allocation2] sm:$0xff] %vm120, %v169
    %172 = vst.msk [vmem:[#allocation2 + $0x8] sm:$0xff] %vm120, %v170
    // Predicated region
    $region26: #{tpu_custom_call.1} parent=1 // pred_check
      _
    $region27: #{tpu_custom_call.1} parent=1 // pred_check_branch
      %174 = sbr.rel (0) target = $region29
    $region28: #{tpu_custom_call.1} parent=1 // pred_region
      %s176 = ssub.s32 256, 256
      %177 = vsyncadd [#allocation3], %s176
      %s178 = sshll.u32 [#allocation2], 4
      %s179 = int_to_ptr.vmem [resolvable:$true] %s178
      %184 = dma.vmem_to_hbm [thread:$0]  %s179, 256, %s6, [#allocation3], 128, 128, 8
    $region29: #{tpu_custom_call.1} parent=1 // pred_fallthru
      _
    // Predicated region
    $region30: #{tpu_custom_call.1} parent=1 // pred_check
      _
    $region31: #{tpu_custom_call.1} parent=1 // pred_check_branch
      %186 = sbr.rel (0) target = $region33
    $region32: #{tpu_custom_call.1} parent=1 // pred_region
      %187 = dma.done [#allocation3], 256
    $region33: #{tpu_custom_call.1} parent=1 // pred_fallthru
      _
    %188 = vsyncpa [#allocation3], 1

</llo_original>
